<compile_context>
chip_gen: v6e
topology: v6e:2x2x1
jax: 0.10.0
libtpu: 0.0.40
codegen_flags: <defaults>
</compile_context>

<pallas_src>
import functools

import jax
import jax.numpy as jnp
from jax.experimental import pallas as pl
from jax.experimental.pallas import tpu as pltpu


def _round_up(a, b):
    return (a + b - 1) // b * b


def _vmem_capacity_bytes():
    """Physical VMEM per TensorCore; conservative fallback if the query fails."""
    try:
        cap = int(pltpu.get_tpu_info().vmem_capacity_bytes)
        if cap > 0:
            return cap
    except Exception:
        pass
    return 64 * 1024 * 1024  # v7x-sized fallback; safe on v5e/v6e as well.


# ----------------------------- Pass A ---------------------------------------
# Channel statistics of x: sum_x (Cin, 1) and Gram = x @ x^T (Cin, Cin),
# accumulated fully in-kernel over the per-partition batch axis and the
# HW-tile axis (both "arbitrary"); only n_part partials are written to HBM.
def _stats_kernel(x_ref, s_ref, g_ref, *, hw, tl, need_mask):
    b = pl.program_id(1)
    t = pl.program_id(2)

    @pl.when((b == 0) & (t == 0))
    def _():
        s_ref[...] = jnp.zeros_like(s_ref)
        g_ref[...] = jnp.zeros_like(g_ref)

    x = x_ref[0].astype(jnp.float32)                       # (Cin, TL)
    if need_mask:
        # Zero the ragged tail columns of the last tile: zero columns add
        # nothing to sum/Gram, so the BN statistics stay exact without ever
        # materializing a padded copy of x in HBM.
        col = jax.lax.broadcasted_iota(jnp.int32, x.shape, 1)
        x = jnp.where(col < (hw - t * tl), x, 0.0)

    s_ref[0] += jnp.sum(x, axis=1, keepdims=True)           # (Cin, 1)
    g_ref[0] += jax.lax.dot_general(                         # (Cin, Cin) on MXU
        x, x, (((1,), (1,)), ((), ())), preferred_element_type=jnp.float32)


# ----------------------------- Pass B ---------------------------------------
# Fused conv + BN + ReLU with BN folded into the weights:
#   out = relu(W' @ x + b'),  W' = W * scale[:, None],  b' = b*scale + shift.
def _fused_conv_bn_relu_kernel(x_ref, w_ref, b_ref, o_ref):
    w = w_ref[...]                                           # (Cout, Cin), f32 or bf16
    x = x_ref[0].astype(w.dtype)                             # (Cin, TL)
    y = jnp.dot(w, x, preferred_element_type=jnp.float32)    # (Cout, TL) on MXU, f32 acc
    o_ref[0] = jnp.maximum(y + b_ref[...], 0.0).astype(o_ref.dtype)


@functools.partial(jax.jit, static_argnames=("tl_target", "out_dtype"))
def conv1x1_bn_relu(x_nchw, weight, bias, gamma, beta, *,
                    eps=1e-5, tl_target=None, out_dtype=None):
    """x_nchw: (N, Cin, H, W).  weight: (Cout, Cin) from the 1x1 conv kernel."""
    n, cin, h, w = x_nchw.shape
    cout = weight.shape[0]
    hw = h * w
    m = n * hw

    out_dtype = jnp.dtype(out_dtype) if out_dtype is not None else x_nchw.dtype
    x_item = x_nchw.dtype.itemsize
    out_item = jnp.dtype(out_dtype).itemsize

    # bf16 MXU operands only pay off once the matmul is non-trivial; for small
    # channel counts pass B is HBM-bound and f32 keeps accuracy tight.
    use_bf16_mxu = (cin >= 256 and cout >= 256)
    w_dtype = jnp.bfloat16 if use_bf16_mxu else jnp.float32
    w_item = jnp.dtype(w_dtype).itemsize

    vmem_cap = _vmem_capacity_bytes()
    if tl_target is None:
        # Bigger lane tiles on 128 MiB parts (v5e/v6e); 512 on 64 MiB v7x.
        tl_target = 1024 if vmem_cap >= (100 << 20) else 512

    # Lane tile: multiple of 128, capped at the (rounded-up) spatial extent so
    # small late-stage feature maps (7x7, 14x14) use one fat block per image.
    tl = min(_round_up(tl_target, 128), _round_up(hw, 128))

    def _block_bytes(tl_):
        ba = 2 * cin * tl_ * x_item + 2 * (cin * cin + cin) * 4
        bb = (2 * cin * tl_ * x_item + 2 * cout * tl_ * out_item
              + cout * cin * w_item + cout * 4)
        return max(ba, bb)

    # Back off the lane tile if double-buffered blocks would leave the compiler
    # no VMEM headroom (matters mainly on v7x's 64 MiB per-TC VMEM).
    # TODO(synk): for cin >~ 2048 the resident (Cin,Cin) Gram alone approaches
    # v7x's VMEM; block the Gram output over a Cin-tile grid axis in that case.
    while tl > 128 and _block_bytes(tl) > vmem_cap - (24 << 20):
        tl -= 128

    grid_t = pl.cdiv(hw, tl)
    need_mask = (hw % tl) != 0

    bytes_a = 2 * cin * tl * x_item + 2 * (cin * cin + cin) * 4
    bytes_b = (2 * cin * tl * x_item + 2 * cout * tl * out_item
               + cout * cin * w_item + cout * 4)

    def _vmem_limit(block_bytes):
        want = block_bytes + (16 << 20)                      # blocks + headroom
        return int(min(max(want, 32 << 20), vmem_cap - (8 << 20)))

    # NCHW -> (N, Cin, H*W) is a free, contiguous reshape (channel-major kept;
    # no transpose, no dtype copy in HBM — casts happen inside the kernels).
    x3 = x_nchw.reshape(n, cin, hw)

    # 2-way batch partition: both v7x TensorCores stay busy on the stats pass;
    # on single-TC v5e/v6e it only costs one extra tiny partial writeback.
    n_part = 2 if (n >= 2 and n % 2 == 0) else 1
    n_per = n // n_part

    # --------------------- Pass A: channel stats of x ----------------------
    stats_kernel = functools.partial(_stats_kernel, hw=hw, tl=tl,
                                     need_mask=need_mask)
    s_part, g_part = pl.pallas_call(
        stats_kernel,
        out_shape=(
            jax.ShapeDtypeStruct((n_part, cin, 1), jnp.float32),
            jax.ShapeDtypeStruct((n_part, cin, cin), jnp.float32),
        ),
        grid_spec=pltpu.PrefetchScalarGridSpec(
            num_scalar_prefetch=0,
            grid=(n_part, n_per, grid_t),
            in_specs=[pl.BlockSpec((1, cin, tl),
                                   lambda p, b, t: (p * n_per + b, 0, t))],
            out_specs=[
                pl.BlockSpec((1, cin, 1), lambda p, b, t: (p, 0, 0)),
                pl.BlockSpec((1, cin, cin), lambda p, b, t: (p, 0, 0)),
            ],
        ),
        compiler_params=pltpu.CompilerParams(
            dimension_semantics=("parallel", "arbitrary", "arbitrary"),
            vmem_limit_bytes=_vmem_limit(bytes_a),
        ),
    )(x3)

    # ------------- Tiny analytic BN math (C scalars) in plain JAX -----------
    w2d = weight.astype(jnp.float32)                 # (Cout, Cin)
    b1d = bias.astype(jnp.float32)                   # (Cout,)

    s_x = jnp.sum(s_part, axis=0)[:, 0]              # (Cin,)
    gram = jnp.sum(g_part, axis=0)                   # (Cin, Cin)

    mean_x = s_x / m                                 # (Cin,)
    mean_y = w2d @ mean_x + b1d                      # (Cout,)
    # Centered second moment of x; var(y_o) = W_o Cov_x W_o^T, lowered as one
    # MXU matmul + rowwise reduce.
    cov_x = gram / m - jnp.outer(mean_x, mean_x)     # (Cin, Cin)
    var_y = jnp.sum((w2d @ cov_x) * w2d, axis=1)     # (Cout,)
    # Guard against E[x^2]-mean^2 cancellation pushing var slightly negative.
    var_y = jnp.maximum(var_y, 0.0)

    inv_std = jax.lax.rsqrt(var_y + eps)             # (Cout,)
    scale = gamma.astype(jnp.float32) * inv_std
    shift = beta.astype(jnp.float32) - mean_y * scale

    w_fused = (w2d * scale[:, None]).astype(w_dtype)     # (Cout, Cin)
    b_fused = (b1d * scale + shift).reshape(cout, 1)     # (Cout, 1), f32

    # ------------------ Pass B: fused conv + BN + ReLU ----------------------
    out3 = pl.pallas_call(
        _fused_conv_bn_relu_kernel,
        out_shape=jax.ShapeDtypeStruct((n, cout, hw), out_dtype),
        grid_spec=pltpu.PrefetchScalarGridSpec(
            num_scalar_prefetch=0,
            grid=(n, grid_t),
            in_specs=[
                pl.BlockSpec((1, cin, tl), lambda b, t: (b, 0, t)),
                pl.BlockSpec((cout, cin), lambda b, t: (0, 0)),
                pl.BlockSpec((cout, 1), lambda b, t: (0, 0)),
            ],
            out_specs=pl.BlockSpec((1, cout, tl), lambda b, t: (b, 0, t)),
        ),
        compiler_params=pltpu.CompilerParams(
            dimension_semantics=("parallel", "parallel"),
            vmem_limit_bytes=_vmem_limit(bytes_b),
        ),
    )(x3, w_fused, b_fused)

    # Layout is already NCHW (channel-major); pure reshape, no copy/slice.
    return out3.reshape(n, cout, h, w)


def _reference(x_nchw, weight, bias, gamma, beta, eps=1e-5):
    """Pure-JAX reference mimicking PyTorch Conv2d(1x1)+BatchNorm2d(train)+ReLU."""
    y = jnp.einsum("nchw,oc->nohw", x_nchw, weight) + bias[None, :, None, None]
    mean = jnp.mean(y, axis=(0, 2, 3), keepdims=True)
    var = jnp.mean((y - mean) ** 2, axis=(0, 2, 3), keepdims=True)
    yn = (y - mean) / jnp.sqrt(var + eps)
    yn = yn * gamma[None, :, None, None] + beta[None, :, None, None]
    return jnp.maximum(yn, 0.0)


if __name__ == "__main__":
    key = jax.random.PRNGKey(0)
    k_x, k_w, k_b, k_g, k_bt = jax.random.split(key, 5)

    N, CIN, H, W = 2, 4, 16, 16
    COUT = 8

    x = jax.random.normal(k_x, (N, CIN, H, W), dtype=jnp.float32)
    # nn.Conv2d(inplanes, planes, 1) weight: (planes, inplanes, 1, 1) -> (planes, inplanes)
    weight = 0.5 * jax.random.normal(k_w, (COUT, CIN), dtype=jnp.float32)
    bias = 0.1 * jax.random.normal(k_b, (COUT,), dtype=jnp.float32)
    # BatchNorm2d affine params (deterministic, non-trivial)
    gamma = 1.0 + 0.1 * jax.random.normal(k_g, (COUT,), dtype=jnp.float32)
    beta = 0.1 * jax.random.normal(k_bt, (COUT,), dtype=jnp.float32)

    out = conv1x1_bn_relu(x, weight, bias, gamma, beta)
    out = jax.block_until_ready(out)

    ref = _reference(x, weight, bias, gamma, beta)
    assert out.shape == (N, COUT, H, W), out.shape
    assert jnp.allclose(out, ref, atol=5e-4, rtol=5e-4), (
        float(jnp.max(jnp.abs(out - ref))))

    print("KERNEL_OK")
</pallas_src>

<mosaic_0001>
module attributes {stable_mosaic.version = 11 : i64} {
  func.func @_stats_kernel(%arg0: i32, %arg1: i32, %arg2: i32, %arg3: memref<1x4x256xf32, #tpu.memory_space<vmem>>, %arg4: memref<1x4x1xf32, #tpu.memory_space<vmem>>, %arg5: memref<1x4x4xf32, #tpu.memory_space<vmem>>) attributes {dimension_semantics = [#tpu.dimension_semantics<parallel>, #tpu.dimension_semantics<arbitrary>, #tpu.dimension_semantics<arbitrary>], iteration_bounds = array<i64: 2, 1, 1>, scalar_prefetch = 0 : i64, scratch_operands = 0 : i64, tpu.core_type = #tpu.core_type<tc>, window_params = [{transform_indices = @transform_0, window_bounds = array<i64: 1, 4, 256>}, {transform_indices = @transform_1, window_bounds = array<i64: 1, 4, 1>}, {transform_indices = @transform_2, window_bounds = array<i64: 1, 4, 4>}]} {
    %c0_i32 = arith.constant 0 : i32
    %0 = arith.cmpi eq, %arg1, %c0_i32 : i32
    %c0_i32_0 = arith.constant 0 : i32
    %1 = arith.cmpi eq, %arg2, %c0_i32_0 : i32
    %2 = arith.andi %0, %1 : i1
    %3 = arith.extui %2 : i1 to i32
    %c0_i32_1 = arith.constant 0 : i32
    %4 = arith.cmpi ne, %3, %c0_i32_1 : i32
    scf.if %4 {
      %cst_17 = arith.constant 0.000000e+00 : f32
      %22 = vector.broadcast %cst_17 : f32 to vector<1x4x1xf32>
      %c0_18 = arith.constant 0 : index
      %c0_19 = arith.constant 0 : index
      %c0_20 = arith.constant 0 : index
      %23 = vector.load %arg4[%c0_18, %c0_19, %c0_20] : memref<1x4x1xf32, #tpu.memory_space<vmem>>, vector<1x4x1xf32>
      tpu.vector_store %arg4[%c0_18, %c0_19, %c0_20], %22 {strides = array<i32>} : memref<1x4x1xf32, #tpu.memory_space<vmem>>, vector<1x4x1xf32>,
      %cst_21 = arith.constant 0.000000e+00 : f32
      %24 = vector.broadcast %cst_21 : f32 to vector<1x4x4xf32>
      %c0_22 = arith.constant 0 : index
      %c0_23 = arith.constant 0 : index
      %c0_24 = arith.constant 0 : index
      %25 = vector.load %arg5[%c0_22, %c0_23, %c0_24] : memref<1x4x4xf32, #tpu.memory_space<vmem>>, vector<1x4x4xf32>
      tpu.vector_store %arg5[%c0_22, %c0_23, %c0_24], %24 {strides = array<i32>} : memref<1x4x4xf32, #tpu.memory_space<vmem>>, vector<1x4x4xf32>,
    } else {
    }
    %c0 = arith.constant 0 : index
    %c0_2 = arith.constant 0 : index
    %c0_3 = arith.constant 0 : index
    %5 = vector.load %arg3[%c0, %c0_2, %c0_3] : memref<1x4x256xf32, #tpu.memory_space<vmem>>, vector<1x4x256xf32>
    %6 = vector.shape_cast %5 : vector<1x4x256xf32> to vector<4x256xf32>
    %c0_4 = arith.constant 0 : index
    %c0_5 = arith.constant 0 : index
    %c0_6 = arith.constant 0 : index
    %7 = vector.load %arg4[%c0_4, %c0_5, %c0_6] : memref<1x4x1xf32, #tpu.memory_space<vmem>>, vector<1x4x1xf32>
    %8 = vector.shape_cast %7 : vector<1x4x1xf32> to vector<4x1xf32>
    %cst = arith.constant dense<0.000000e+00> : vector<4xf32>
    %9 = vector.multi_reduction <add>, %6, %cst [1] : vector<4x256xf32> to vector<4xf32>
    %10 = vector.shape_cast %9 : vector<4xf32> to vector<4x1xf32>
    %11 = arith.addf %8, %10 : vector<4x1xf32>
    %c0_7 = arith.constant 0 : index
    %c0_8 = arith.constant 0 : index
    %c0_9 = arith.constant 0 : index
    %12 = vector.load %arg4[%c0_7, %c0_8, %c0_9] : memref<1x4x1xf32, #tpu.memory_space<vmem>>, vector<1x4x1xf32>
    %13 = vector.shape_cast %12 : vector<1x4x1xf32> to vector<4x1xf32>
    %14 = vector.shape_cast %11 : vector<4x1xf32> to vector<1x4x1xf32>
    tpu.vector_store %arg4[%c0_7, %c0_8, %c0_9], %14 {strides = array<i32>} : memref<1x4x1xf32, #tpu.memory_space<vmem>>, vector<1x4x1xf32>,
    %c0_10 = arith.constant 0 : index
    %c0_11 = arith.constant 0 : index
    %c0_12 = arith.constant 0 : index
    %15 = vector.load %arg5[%c0_10, %c0_11, %c0_12] : memref<1x4x4xf32, #tpu.memory_space<vmem>>, vector<1x4x4xf32>
    %16 = vector.shape_cast %15 : vector<1x4x4xf32> to vector<4x4xf32>
    %cst_13 = arith.constant dense<0.000000e+00> : vector<4x4xf32>
    %17 = tpu.matmul %6, %6, %cst_13 {dimension_numbers = #tpu.dot_dimension_numbers<[1], [1], [0], [0], [0, 0, 1, 0], [], []>} : vector<4x256xf32>, vector<4x256xf32>, vector<4x4xf32> -> vector<4x4xf32>
    %18 = arith.addf %16, %17 : vector<4x4xf32>
    %c0_14 = arith.constant 0 : index
    %c0_15 = arith.constant 0 : index
    %c0_16 = arith.constant 0 : index
    %19 = vector.load %arg5[%c0_14, %c0_15, %c0_16] : memref<1x4x4xf32, #tpu.memory_space<vmem>>, vector<1x4x4xf32>
    %20 = vector.shape_cast %19 : vector<1x4x4xf32> to vector<4x4xf32>
    %21 = vector.shape_cast %18 : vector<4x4xf32> to vector<1x4x4xf32>
    tpu.vector_store %arg5[%c0_14, %c0_15, %c0_16], %21 {strides = array<i32>} : memref<1x4x4xf32, #tpu.memory_space<vmem>>, vector<1x4x4xf32>,
    return
  }
  func.func @transform_0(%arg0: i32, %arg1: i32, %arg2: i32) -> (i32, i32, i32) {
    %c1_i32 = arith.constant 1 : i32
    %0 = arith.muli %arg0, %c1_i32 : i32
    %1 = arith.addi %0, %arg1 : i32
    %c0_i32 = arith.constant 0 : i32
    %c0_i32_0 = arith.constant 0 : i32
    return %1, %c0_i32, %arg2 : i32, i32, i32
  }
  func.func @transform_1(%arg0: i32, %arg1: i32, %arg2: i32) -> (i32, i32, i32) {
    %c0_i32 = arith.constant 0 : i32
    %c0_i32_0 = arith.constant 0 : i32
    %c0_i32_1 = arith.constant 0 : i32
    return %arg0, %c0_i32, %c0_i32_0 : i32, i32, i32
  }
  func.func @transform_2(%arg0: i32, %arg1: i32, %arg2: i32) -> (i32, i32, i32) {
    %c0_i32 = arith.constant 0 : i32
    %c0_i32_0 = arith.constant 0 : i32
    %c0_i32_1 = arith.constant 0 : i32
    return %arg0, %c0_i32, %c0_i32_0 : i32, i32, i32
  }
}

module attributes {stable_mosaic.version = 11 : i64} {
  func.func @_fused_conv_bn_relu_kernel(%arg0: i32, %arg1: i32, %arg2: memref<1x4x256xf32, #tpu.memory_space<vmem>>, %arg3: memref<8x4xf32, #tpu.memory_space<vmem>>, %arg4: memref<8x1xf32, #tpu.memory_space<vmem>>, %arg5: memref<1x8x256xf32, #tpu.memory_space<vmem>>) attributes {dimension_semantics = [#tpu.dimension_semantics<parallel>, #tpu.dimension_semantics<parallel>], iteration_bounds = array<i64: 2, 1>, scalar_prefetch = 0 : i64, scratch_operands = 0 : i64, tpu.core_type = #tpu.core_type<tc>, window_params = [{transform_indices = @transform_0, window_bounds = array<i64: 1, 4, 256>}, {pipeline_mode = #tpu.pipeline_mode<synchronous>, transform_indices = @transform_1, window_bounds = array<i64: 8, 4>}, {pipeline_mode = #tpu.pipeline_mode<synchronous>, transform_indices = @transform_2, window_bounds = array<i64: 8, 1>}, {transform_indices = @transform_3, window_bounds = array<i64: 1, 8, 256>}]} {
    %c0 = arith.constant 0 : index
    %c0_0 = arith.constant 0 : index
    %0 = vector.load %arg3[%c0, %c0_0] : memref<8x4xf32, #tpu.memory_space<vmem>>, vector<8x4xf32>
    %c0_1 = arith.constant 0 : index
    %c0_2 = arith.constant 0 : index
    %c0_3 = arith.constant 0 : index
    %1 = vector.load %arg2[%c0_1, %c0_2, %c0_3] : memref<1x4x256xf32, #tpu.memory_space<vmem>>, vector<1x4x256xf32>
    %2 = vector.shape_cast %1 : vector<1x4x256xf32> to vector<4x256xf32>
    %cst = arith.constant dense<0.000000e+00> : vector<8x256xf32>
    %3 = tpu.matmul %0, %2, %cst {dimension_numbers = #tpu.dot_dimension_numbers<[1], [0], [0], [1], [0, 0, 1, 1], [], []>} : vector<8x4xf32>, vector<4x256xf32>, vector<8x256xf32> -> vector<8x256xf32>
    %c0_4 = arith.constant 0 : index
    %c0_5 = arith.constant 0 : index
    %4 = vector.load %arg4[%c0_4, %c0_5] : memref<8x1xf32, #tpu.memory_space<vmem>>, vector<8x1xf32>
    %5 = vector.broadcast %4 : vector<8x1xf32> to vector<8x256xf32>
    %6 = arith.addf %3, %5 : vector<8x256xf32>
    %cst_6 = arith.constant 0.000000e+00 : f32
    %7 = vector.broadcast %cst_6 : f32 to vector<8x256xf32>
    %8 = arith.maximumf %6, %7 : vector<8x256xf32>
    %c0_7 = arith.constant 0 : index
    %c0_8 = arith.constant 0 : index
    %c0_9 = arith.constant 0 : index
    %9 = vector.load %arg5[%c0_7, %c0_8, %c0_9] : memref<1x8x256xf32, #tpu.memory_space<vmem>>, vector<1x8x256xf32>
    %10 = vector.shape_cast %9 : vector<1x8x256xf32> to vector<8x256xf32>
    %11 = vector.shape_cast %8 : vector<8x256xf32> to vector<1x8x256xf32>
    tpu.vector_store %arg5[%c0_7, %c0_8, %c0_9], %11 {strides = array<i32>} : memref<1x8x256xf32, #tpu.memory_space<vmem>>, vector<1x8x256xf32>,
    return
  }
  func.func @transform_0(%arg0: i32, %arg1: i32) -> (i32, i32, i32) {
    %c0_i32 = arith.constant 0 : i32
    %c0_i32_0 = arith.constant 0 : i32
    return %arg0, %c0_i32, %arg1 : i32, i32, i32
  }
  func.func @transform_1(%arg0: i32, %arg1: i32) -> (i32, i32) {
    %c0_i32 = arith.constant 0 : i32
    %c0_i32_0 = arith.constant 0 : i32
    %c0_i32_1 = arith.constant 0 : i32
    return %c0_i32, %c0_i32_0 : i32, i32
  }
  func.func @transform_2(%arg0: i32, %arg1: i32) -> (i32, i32) {
    %c0_i32 = arith.constant 0 : i32
    %c0_i32_0 = arith.constant 0 : i32
    %c0_i32_1 = arith.constant 0 : i32
    return %c0_i32, %c0_i32_0 : i32, i32
  }
  func.func @transform_3(%arg0: i32, %arg1: i32) -> (i32, i32, i32) {
    %c0_i32 = arith.constant 0 : i32
    %c0_i32_0 = arith.constant 0 : i32
    return %arg0, %c0_i32, %arg1 : i32, i32, i32
  }
}

</mosaic_0001>

<llo_original>
// kernel: conv1x1_bn_relu.2
$region0: #{conv1x1_bn_relu.2}
  #allocation0 [shape = 'u32[]', space=smem, size = 0x4, offset = 0x4, fixed_abs, tag = 'smem constant byte address 0x4 - core index']
  #allocation1 [shape = 'u32[144,128]{1,0:T(1,128)}', space=vmem, size = 0x12000, scoped, tag = 'internal scratch']
  %s0 = inlined_call_operand.vmem [shape: f32[2,4,256], index: 0, kind: input, shape index: {}]
  %s1 = inlined_call_operand.vmem [shape: f32[2,4,1], index: 1, kind: output, shape index: {0}]
  %s2 = inlined_call_operand.vmem [shape: f32[2,4,4], index: 2, kind: output, shape index: {1}]
  %3 = xla_tuple %s1, %s2
  %s4 = sld [smem:[#allocation0]]
  $region49: #{conv1x1_bn_relu.2} parent=0
    _
  %s6 = ssub.s32 1, %s4
  %s7 = scalar_select 0, %s6, %s4
  loop: start=0, step=1, limit=4
  $region2: #{conv1x1_bn_relu.2} parent=0 // loop_pre_header
    _
  $region3: #{conv1x1_bn_relu.2} parent=0 // loop_header
    %s9 = sphi 0, %s13
    %p10 = scmp.ge.s32.totalorder %s9, 4
    %s16 = sphi 0, %s35
    %s17 = sphi 0, %s31
    %s18 = sphi 0, %s27
    %s19 = sphi 0, %s16
    %s20 = sphi 0, %s17
    %s21 = sphi 0, %s18
    %s22 = sphi 0, %s19
    %s23 = sphi 0, %s20
    %s24 = sphi 0, %s21
    %s42 = sphi 0, %s44
    %s45 = sphi 0, %s42
    %s46 = sphi 0, %s45
    %s62 = sphi 0, %s46
    %s68 = sphi 0, %s70
    %s71 = sphi 0, %s68
    %s72 = sphi 0, %s71
    %s88 = sphi 0, %s72
    %s94 = sphi 0, %s96
    %s97 = sphi 0, %s94
    %s98 = sphi 0, %s97
    %s114 = sphi 0, %s98
  $region4: #{conv1x1_bn_relu.2} parent=0 // loop_header_branch
    %12 = sbr.rel (%p10) target = $region8
  $region5: #{conv1x1_bn_relu.2} parent=0 // loop_body
    %s14 = ssub.s32 %s9, 1
    %s15 = ssub.s32 %s9, 2
    %s25 = sadd.s32 1, %s18
    %p26 = scmp.ge.s32.totalorder %s25, 1
    %s27 = scalar_select %p26, 0, %s25
    %s28 = sadd.s32 1, %s17
    %s29 = scalar_select %p26, %s28, %s17
    %p30 = scmp.ge.s32.totalorder %s29, 1
    %s31 = scalar_select %p30, 0, %s29
    %s32 = sadd.s32 1, %s16
    %s33 = scalar_select %p30, %s32, %s16
    %p34 = scmp.ge.s32.totalorder %s33, 2
    %s35 = scalar_select %p34, 0, %s33
    %s36 = sadd.s32 %s16, %s17
    %s37 = sadd.s32 %s35, %s31
    %s38 = ssub.s32 %s36, %s37
    %s39 = ssub.s32 %s18, %s27
    %s40 = sor.u32 %s38, %s39
    %p41 = scmp.eq.s32.totalorder %s40, 0
    %s43 = sadd.s32 %s42, 1
    %s44 = scalar_select %p41, %s42, %s43
    %p47 = pneg %p41
    %p48 = scmp.eq.s32.totalorder %s9, 1
    %p49 = por %p47, %p48
    %p50 = scmp.ne.s32.totalorder %s42, %s45
    %p51 = scmp.eq.s32.totalorder %s9, 0
    %p52 = por %p50, %p51
    %p53 = scmp.ne.s32.totalorder %s42, %s45
    %p54 = scmp.eq.s32.totalorder %s14, 1
    %p55 = por %p53, %p54
    %p56 = scmp.ne.s32.totalorder %s45, %s46
    %p57 = scmp.eq.s32.totalorder %s14, 0
    %p58 = por %p56, %p57
    %p59 = scmp.ne.s32.totalorder %s45, %s46
    %p60 = scmp.eq.s32.totalorder %s15, 1
    %p61 = por %p59, %p60
    %p63 = scmp.ne.s32.totalorder %s46, %s62
    %p64 = scmp.eq.s32.totalorder %s15, 0
    %p65 = por %p63, %p64
    %s66 = ssub.s32 %s16, %s35
    %p67 = scmp.eq.s32.totalorder %s66, 0
    %s69 = sadd.s32 %s68, 1
    %s70 = scalar_select %p67, %s68, %s69
    %p73 = pneg %p67
    %p74 = scmp.eq.s32.totalorder %s9, 1
    %p75 = por %p73, %p74
    %p76 = scmp.ne.s32.totalorder %s68, %s71
    %p77 = scmp.eq.s32.totalorder %s9, 0
    %p78 = por %p76, %p77
    %p79 = scmp.ne.s32.totalorder %s68, %s71
    %p80 = scmp.eq.s32.totalorder %s14, 1
    %p81 = por %p79, %p80
    %p82 = scmp.ne.s32.totalorder %s71, %s72
    %p83 = scmp.eq.s32.totalorder %s14, 0
    %p84 = por %p82, %p83
    %p85 = scmp.ne.s32.totalorder %s71, %s72
    %p86 = scmp.eq.s32.totalorder %s15, 1
    %p87 = por %p85, %p86
    %p89 = scmp.ne.s32.totalorder %s72, %s88
    %p90 = scmp.eq.s32.totalorder %s15, 0
    %p91 = por %p89, %p90
    %s92 = ssub.s32 %s16, %s35
    %p93 = scmp.eq.s32.totalorder %s92, 0
    %s95 = sadd.s32 %s94, 1
    %s96 = scalar_select %p93, %s94, %s95
    %p99 = pneg %p93
    %p100 = scmp.eq.s32.totalorder %s9, 1
    %p101 = por %p99, %p100
    %p102 = scmp.ne.s32.totalorder %s94, %s97
    %p103 = scmp.eq.s32.totalorder %s9, 0
    %p104 = por %p102, %p103
    %p105 = scmp.ne.s32.totalorder %s94, %s97
    %p106 = scmp.eq.s32.totalorder %s14, 1
    %p107 = por %p105, %p106
    %p108 = scmp.ne.s32.totalorder %s97, %s98
    %p109 = scmp.eq.s32.totalorder %s14, 0
    %p110 = por %p108, %p109
    %p111 = scmp.ne.s32.totalorder %s97, %s98
    %p112 = scmp.eq.s32.totalorder %s15, 1
    %p113 = por %p111, %p112
    %p115 = scmp.ne.s32.totalorder %s98, %s114
    %p116 = scmp.eq.s32.totalorder %s15, 0
    %p117 = por %p115, %p116
    %p118 = scmp.le.s32.totalorder 1, %s9
    %p119 = scmp.lt.s32.totalorder %s9, 3
    %p120 = pnand %p118, %p119
    %p121 = pneg %p120
    // Predicated region
    $region9: #{conv1x1_bn_relu.2} parent=5 // pred_check
      _
    $region10: #{conv1x1_bn_relu.2} parent=5 // pred_check_branch
      %123 = sbr.rel (%p120) target = $region12
    $region11: #{conv1x1_bn_relu.2} parent=5 // pred_region
      %s124 = ssub.s32 %s9, 1
    $region12: #{conv1x1_bn_relu.2} parent=5 // pred_fallthru
      _
    %p125 = scmp.lt.s32.totalorder %s9, 2
    // Predicated region
    $region13: #{conv1x1_bn_relu.2} parent=5 // pred_check
      %p126 = pneg %p125
    $region14: #{conv1x1_bn_relu.2} parent=5 // pred_check_branch
      %128 = sbr.rel (%p126) target = $region16
    $region15: #{conv1x1_bn_relu.2} parent=5 // pred_region
      // Predicated region
      $region17: #{conv1x1_bn_relu.2} parent=15 // pred_check
        %p129 = pneg %p52
      $region18: #{conv1x1_bn_relu.2} parent=15 // pred_check_branch
        %131 = sbr.rel (%p129) target = $region20
      $region19: #{conv1x1_bn_relu.2} parent=15 // pred_region
        %s132 = sadd.s32 %s16, %s17
        %s133 = smul.u32 2, %s18
        %p134 = scmp.lt.s32.totalorder %s132, 1
        %s135 = scalar_select %p134, %s132, 1
        %p136 = scmp.lt.s32.totalorder %s133, 1
        %s137 = scalar_select %p136, %s133, 1
        %s138 = smul.addr %s135, 2
        %s139 = sadd.s32 %s137, %s138
        %s140 = smul.addr %s139, 4
        %s141 = scalar_lea.vmem %s0, %s140
        %s142 = sadd.s32 %s16, %s17
        %s143 = smul.u32 2, %s18
      $region20: #{conv1x1_bn_relu.2} parent=15 // pred_fallthru
        _
    $region16: #{conv1x1_bn_relu.2} parent=5 // pred_fallthru
      _
    %p144 = scmp.le.s32.totalorder 1, %s9
    %p145 = scmp.lt.s32.totalorder %s9, 3
    %p146 = pnand %p144, %p145
    %p147 = pneg %p146
    // Predicated region
    $region21: #{conv1x1_bn_relu.2} parent=5 // pred_check
      _
    $region22: #{conv1x1_bn_relu.2} parent=5 // pred_check_branch
      %149 = sbr.rel (%p146) target = $region24
    $region23: #{conv1x1_bn_relu.2} parent=5 // pred_region
      %s150 = ssub.s32 %s9, 1
      %s151 = sadd.s32 %s19, %s20
      %s152 = smul.u32 2, %s21
      %p153 = scmp.lt.s32.totalorder %s151, 1
      %s154 = scalar_select %p153, %s151, 1
      %p155 = scmp.lt.s32.totalorder %s152, 1
      %s156 = scalar_select %p155, %s152, 1
      %s157 = smul.addr %s154, 2
      %s158 = sadd.s32 %s156, %s157
      %s159 = smul.addr %s158, 4
      %s160 = scalar_lea.vmem %s0, %s159
      %p161 = pneg %p58
      %p162 = pneg %p55
      %p163 = pneg %p84
      %p164 = pneg %p81
      %p165 = scmp.lt.s32.totalorder %s19, 1
      %s166 = scalar_select %p165, %s19, 1
      %s167 = smul.addr %s166, 4
      %s168 = scalar_lea.vmem %s1, %s167
      %p169 = pneg %p110
      %p170 = pneg %p107
      %p171 = scmp.lt.s32.totalorder %s19, 1
      %s172 = scalar_select %p171, %s19, 1
      %s173 = smul.addr %s172, 4
      %s174 = scalar_lea.vmem %s2, %s173
      %s175 = sadd.s32 %s19, %s20
      %s176 = smul.u32 2, %s21
      %p177 = scmp.lt.s32.totalorder %s175, 1
      %s178 = scalar_select %p177, %s175, 1
      %p179 = scmp.lt.s32.totalorder %s176, 1
      %s180 = scalar_select %p179, %s176, 1
      %s181 = smul.addr %s178, 2
      %s182 = sadd.s32 %s180, %s181
      %s183 = smul.addr %s182, 4
      %s184 = scalar_lea.vmem %s0, %s183
      %s185 = sadd.s32 %s19, %s20
      %s186 = smul.u32 2, %s21
      %p187 = scmp.lt.s32.totalorder %s19, 1
      %s188 = scalar_select %p187, %s19, 1
      %s189 = smul.addr %s188, 4
      %s190 = scalar_lea.vmem %s1, %s189
      %p191 = scmp.lt.s32.totalorder %s19, 1
      %s192 = scalar_select %p191, %s19, 1
      %s193 = smul.addr %s192, 4
      %s194 = scalar_lea.vmem %s2, %s193
      %p195 = scmp.eq.s32.totalorder %s20, 0
      %p196 = scmp.eq.s32.totalorder %s21, 0
      %p197 = pnand %p195, %p196
      %p198 = pneg %p197
      // Predicated region
      $region25: #{conv1x1_bn_relu.2} parent=23 // pred_check
        _
      $region26: #{conv1x1_bn_relu.2} parent=23 // pred_check_branch
        %200 = sbr.rel (%p197) target = $region28
      $region27: #{conv1x1_bn_relu.2} parent=23 // pred_region
        %vm201 = vcmask 3072
        %202 = vst.msk [vmem:[%s190] sm:$0xf] %vm201, 0.0
        %vm203 = vcmask 27648
        %204 = vst.msk [vmem:[%s194] sm:$0xf] %vm203, 0.0
      $region28: #{conv1x1_bn_relu.2} parent=23 // pred_fallthru
        _
      %v205 = vld [vmem:[%s184] sm:$0xff]
      %v206 = vld [vmem:[%s190] sm:$0xf]
      %v208 = vcombine.high %v205, %v205
      %vm210 = vcmask 1043456
      %v211 = vsel %vm210, %v205, 0.0
      %v212 = vsel %vm210, %v208, 0.0
      %v213 = vadd.f32 %v211, %v212
      %214 = vadd.xlane.f32.xlu0 %v213
      %v215 = vpop.xlane.xlu0 %214
      %v216 = vadd.f32 %v206, %v215
      %vm217 = vcmask 3072
      %218 = vst.msk [vmem:[%s190] sm:$0xf] %vm217, %v216
      %v219 = vld [vmem:[%s194] sm:$0xf]
      %220 = vmatprep.subr.mxu0 0.0
      %221 = vmatpush1.xpose.msra.mxu0 0.0
      %222 = vmatprep.subr.mxu0 0.0
      %223 = vmatpush1.xpose.msra.mxu0 0.0
      %224 = vmatprep.subr.mxu0 0.0
      %225 = vmatpush1.xpose.msra.mxu0 0.0
      %226 = vmatprep.subr.mxu0 0.0
      %227 = vmatpush1.xpose.msra.mxu0 0.0
      %228 = vmatprep.subr.mxu0 0.0
      %229 = vmatpush1.xpose.msra.mxu0 0.0
      %230 = vmatprep.subr.mxu0 0.0
      %231 = vmatpush1.xpose.msra.mxu0 0.0
      %232 = vmatprep.subr.mxu0 0.0
      %233 = vmatpush1.xpose.msra.mxu0 0.0
      %234 = vmatprep.subr.mxu0 0.0
      %235 = vmatpush1.xpose.msra.mxu0 0.0
      %236 = vmatprep.subr.mxu0 0.0
      %237 = vmatpush1.xpose.msra.mxu0 0.0
      %238 = vmatprep.subr.mxu0 0.0
      %239 = vmatpush1.xpose.msra.mxu0 0.0
      %240 = vmatprep.subr.mxu0 0.0
      %241 = vmatpush1.xpose.msra.mxu0 0.0
      %242 = vmatprep.subr.mxu0 0.0
      %243 = vmatpush1.xpose.msra.mxu0 0.0
      %244 = vmatprep.subr.mxu0 0.0
      %245 = vmatpush1.xpose.msra.mxu0 0.0
      %246 = vmatprep.subr.mxu0 0.0
      %247 = vmatpush1.xpose.msra.mxu0 0.0
      %248 = vmatprep.subr.mxu0 0.0
      %249 = vmatpush1.xpose.msra.mxu0 0.0
      %250 = vmatprep.subr.mxu0 %v208
      %251 = vmatpush1.xpose.msra.mxu0 %v205
      %252 = vmatprep.subr.mxu0 0.0
      %253 = vmatpush2.xpose.msra.mxu0 0.0
      %254 = vmatprep.subr.mxu0 0.0
      %255 = vmatpush2.xpose.msra.mxu0 0.0
      %256 = vmatprep.subr.mxu0 0.0
      %257 = vmatpush2.xpose.msra.mxu0 0.0
      %258 = vmatprep.subr.mxu0 0.0
      %259 = vmatpush2.xpose.msra.mxu0 0.0
      %260 = vmatprep.subr.mxu0 0.0
      %261 = vmatpush2.xpose.msra.mxu0 0.0
      %262 = vmatprep.subr.mxu0 0.0
      %263 = vmatpush2.xpose.msra.mxu0 0.0
      %264 = vmatprep.subr.mxu0 0.0
      %265 = vmatpush2.xpose.msra.mxu0 0.0
      %266 = vmatprep.subr.mxu0 0.0
      %267 = vmatpush2.xpose.msra.mxu0 0.0
      %268 = vmatprep.subr.mxu0 0.0
      %269 = vmatpush2.xpose.msra.mxu0 0.0
      %270 = vmatprep.subr.mxu0 0.0
      %271 = vmatpush2.xpose.msra.mxu0 0.0
      %272 = vmatprep.subr.mxu0 0.0
      %273 = vmatpush2.xpose.msra.mxu0 0.0
      %274 = vmatprep.subr.mxu0 0.0
      %275 = vmatpush2.xpose.msra.mxu0 0.0
      %276 = vmatprep.subr.mxu0 0.0
      %277 = vmatpush2.xpose.msra.mxu0 0.0
      %278 = vmatprep.subr.mxu0 0.0
      %279 = vmatpush2.xpose.msra.mxu0 0.0
      %280 = vmatprep.subr.mxu0 0.0
      %281 = vmatpush2.xpose.msra.mxu0 0.0
      %282 = vmatprep.subr.mxu0 0.0
      %283 = vmatpush2.xpose.msra.mxu0 0.0
      %284 = vmatprep.mubr.f32.mxu0 %v208
      %285 = vmatmul.mubr.f32.gmra.mxu0 %v205
      %v286 = vpop.f32.mrf.mxu0
      %v287 = vadd.f32 0.0, %v286
      %v288 = vpop.f32.mrf.mxu0
      %289 = vdwg.mxu0
      %v290 = vadd.f32 %v219, %v287
      %vm291 = vcmask 27648
      %292 = vst.msk [vmem:[%s194] sm:$0xf] %vm291, %v290
      %p293 = scmp.lt.s32.totalorder %s19, 1
      %s294 = scalar_select %p293, %s19, 1
      %s295 = smul.addr %s294, 4
      %s296 = scalar_lea.vmem %s1, %s295
      %p297 = scmp.lt.s32.totalorder %s19, 1
      %s298 = scalar_select %p297, %s19, 1
      %s299 = smul.addr %s298, 4
      %s300 = scalar_lea.vmem %s2, %s299
      // Predicated region
      $region29: #{conv1x1_bn_relu.2} parent=23 // pred_check
        %p301 = pneg %p81
      $region30: #{conv1x1_bn_relu.2} parent=23 // pred_check_branch
        %303 = sbr.rel (%p301) target = $region32
      $region31: #{conv1x1_bn_relu.2} parent=23 // pred_region
        _
      $region32: #{conv1x1_bn_relu.2} parent=23 // pred_fallthru
        _
      // Predicated region
      $region33: #{conv1x1_bn_relu.2} parent=23 // pred_check
        %p304 = pneg %p107
      $region34: #{conv1x1_bn_relu.2} parent=23 // pred_check_branch
        %306 = sbr.rel (%p304) target = $region36
      $region35: #{conv1x1_bn_relu.2} parent=23 // pred_region
        _
      $region36: #{conv1x1_bn_relu.2} parent=23 // pred_fallthru
        _
    $region24: #{conv1x1_bn_relu.2} parent=5 // pred_fallthru
      _
    %p307 = scmp.le.s32.totalorder 2, %s9
    // Predicated region
    $region37: #{conv1x1_bn_relu.2} parent=5 // pred_check
      %p308 = pneg %p307
    $region38: #{conv1x1_bn_relu.2} parent=5 // pred_check_branch
      %310 = sbr.rel (%p308) target = $region40
    $region39: #{conv1x1_bn_relu.2} parent=5 // pred_region
      %s311 = ssub.s32 %s9, 2
      // Predicated region
      $region41: #{conv1x1_bn_relu.2} parent=39 // pred_check
        %p312 = pneg %p87
      $region42: #{conv1x1_bn_relu.2} parent=39 // pred_check_branch
        %314 = sbr.rel (%p312) target = $region44
      $region43: #{conv1x1_bn_relu.2} parent=39 // pred_region
        %p315 = scmp.lt.s32.totalorder %s22, 1
        %s316 = scalar_select %p315, %s22, 1
        %s317 = smul.addr %s316, 4
        %s318 = scalar_lea.vmem %s1, %s317
      $region44: #{conv1x1_bn_relu.2} parent=39 // pred_fallthru
        _
      // Predicated region
      $region45: #{conv1x1_bn_relu.2} parent=39 // pred_check
        %p319 = pneg %p113
      $region46: #{conv1x1_bn_relu.2} parent=39 // pred_check_branch
        %321 = sbr.rel (%p319) target = $region48
      $region47: #{conv1x1_bn_relu.2} parent=39 // pred_region
        %p322 = scmp.lt.s32.totalorder %s22, 1
        %s323 = scalar_select %p322, %s22, 1
        %s324 = smul.addr %s323, 4
        %s325 = scalar_lea.vmem %s2, %s324
      $region48: #{conv1x1_bn_relu.2} parent=39 // pred_fallthru
        _
    $region40: #{conv1x1_bn_relu.2} parent=5 // pred_fallthru
      _
  $region6: #{conv1x1_bn_relu.2} parent=0 // loop_footer
    %s13 = sadd.s32 1, %s9
  $region7: #{conv1x1_bn_relu.2} parent=0 // loop_footer_branch
    %8 = sbr.rel target = $region3
  $region8: #{conv1x1_bn_relu.2} parent=0 // loop_exit
    _

// kernel: conv1x1_bn_relu.3
$region0: #{conv1x1_bn_relu.3}
  #allocation0 [shape = 'u32[]', space=smem, size = 0x4, offset = 0x4, fixed_abs, tag = 'smem constant byte address 0x4 - core index']
  #allocation1 [shape = 'u32[144,128]{1,0:T(1,128)}', space=vmem, size = 0x12000, scoped, tag = 'internal scratch']
  %s0 = inlined_call_operand.vmem [shape: f32[2,4,256], index: 0, kind: input, shape index: {}]
  %s1 = inlined_call_operand.vmem [shape: f32[8,4], index: 1, kind: input, shape index: {}]
  %s2 = inlined_call_operand.vmem [shape: f32[8,1], index: 2, kind: input, shape index: {}]
  %s3 = inlined_call_operand.vmem [shape: f32[2,8,256], index: 3, kind: output, shape index: {}]
  %s4 = sld [smem:[#allocation0]]
  $region45: #{conv1x1_bn_relu.3} parent=0
    _
  %s6 = ssub.s32 1, %s4
  %s7 = scalar_select 0, %s6, %s4
  loop: start=0, step=1, limit=4
  $region2: #{conv1x1_bn_relu.3} parent=0 // loop_pre_header
    _
  $region3: #{conv1x1_bn_relu.3} parent=0 // loop_header
    %s9 = sphi 0, %s13
    %p10 = scmp.ge.s32.totalorder %s9, 4
    %s16 = sphi 0, %s28
    %s17 = sphi 0, %s24
    %s18 = sphi 0, %s16
    %s19 = sphi 0, %s17
    %s20 = sphi 0, %s18
    %s21 = sphi 0, %s19
    %s33 = sphi 0, %s35
    %s36 = sphi 0, %s33
    %s37 = sphi 0, %s36
    %s53 = sphi 0, %s37
    %s57 = sphi 0, %s57
    %s59 = sphi 0, %s57
    %s60 = sphi 0, %s59
    %s74 = sphi 0, %s60
    %s78 = sphi 0, %s78
    %s80 = sphi 0, %s78
    %s81 = sphi 0, %s80
    %s95 = sphi 0, %s81
    %s103 = sphi 0, %s105
    %s106 = sphi 0, %s103
    %s107 = sphi 0, %s106
    %s123 = sphi 0, %s107
  $region4: #{conv1x1_bn_relu.3} parent=0 // loop_header_branch
    %12 = sbr.rel (%p10) target = $region8
  $region5: #{conv1x1_bn_relu.3} parent=0 // loop_body
    %s14 = ssub.s32 %s9, 1
    %s15 = ssub.s32 %s9, 2
    %s22 = sadd.s32 1, %s17
    %p23 = scmp.ge.s32.totalorder %s22, 1
    %s24 = scalar_select %p23, 0, %s22
    %s25 = sadd.s32 1, %s16
    %s26 = scalar_select %p23, %s25, %s16
    %p27 = scmp.ge.s32.totalorder %s26, 2
    %s28 = scalar_select %p27, 0, %s26
    %s29 = ssub.s32 %s16, %s28
    %s30 = ssub.s32 %s17, %s24
    %s31 = sor.u32 %s29, %s30
    %p32 = scmp.eq.s32.totalorder %s31, 0
    %s34 = sadd.s32 %s33, 1
    %s35 = scalar_select %p32, %s33, %s34
    %p38 = pneg %p32
    %p39 = scmp.eq.s32.totalorder %s9, 1
    %p40 = por %p38, %p39
    %p41 = scmp.ne.s32.totalorder %s33, %s36
    %p42 = scmp.eq.s32.totalorder %s9, 0
    %p43 = por %p41, %p42
    %p44 = scmp.ne.s32.totalorder %s33, %s36
    %p45 = scmp.eq.s32.totalorder %s14, 1
    %p46 = por %p44, %p45
    %p47 = scmp.ne.s32.totalorder %s36, %s37
    %p48 = scmp.eq.s32.totalorder %s14, 0
    %p49 = por %p47, %p48
    %p50 = scmp.ne.s32.totalorder %s36, %s37
    %p51 = scmp.eq.s32.totalorder %s15, 1
    %p52 = por %p50, %p51
    %p54 = scmp.ne.s32.totalorder %s37, %s53
    %p55 = scmp.eq.s32.totalorder %s15, 0
    %p56 = por %p54, %p55
    %s58 = sadd.s32 %s57, 1
    %p61 = scmp.eq.s32.totalorder %s9, 1
    %p62 = scmp.ne.s32.totalorder %s57, %s59
    %p63 = scmp.eq.s32.totalorder %s9, 0
    %p64 = por %p62, %p63
    %p65 = scmp.ne.s32.totalorder %s57, %s59
    %p66 = scmp.eq.s32.totalorder %s14, 1
    %p67 = por %p65, %p66
    %p68 = scmp.ne.s32.totalorder %s59, %s60
    %p69 = scmp.eq.s32.totalorder %s14, 0
    %p70 = por %p68, %p69
    %p71 = scmp.ne.s32.totalorder %s59, %s60
    %p72 = scmp.eq.s32.totalorder %s15, 1
    %p73 = por %p71, %p72
    %p75 = scmp.ne.s32.totalorder %s60, %s74
    %p76 = scmp.eq.s32.totalorder %s15, 0
    %p77 = por %p75, %p76
    %s79 = sadd.s32 %s78, 1
    %p82 = scmp.eq.s32.totalorder %s9, 1
    %p83 = scmp.ne.s32.totalorder %s78, %s80
    %p84 = scmp.eq.s32.totalorder %s9, 0
    %p85 = por %p83, %p84
    %p86 = scmp.ne.s32.totalorder %s78, %s80
    %p87 = scmp.eq.s32.totalorder %s14, 1
    %p88 = por %p86, %p87
    %p89 = scmp.ne.s32.totalorder %s80, %s81
    %p90 = scmp.eq.s32.totalorder %s14, 0
    %p91 = por %p89, %p90
    %p92 = scmp.ne.s32.totalorder %s80, %s81
    %p93 = scmp.eq.s32.totalorder %s15, 1
    %p94 = por %p92, %p93
    %p96 = scmp.ne.s32.totalorder %s81, %s95
    %p97 = scmp.eq.s32.totalorder %s15, 0
    %p98 = por %p96, %p97
    %s99 = ssub.s32 %s16, %s28
    %s100 = ssub.s32 %s17, %s24
    %s101 = sor.u32 %s99, %s100
    %p102 = scmp.eq.s32.totalorder %s101, 0
    %s104 = sadd.s32 %s103, 1
    %s105 = scalar_select %p102, %s103, %s104
    %p108 = pneg %p102
    %p109 = scmp.eq.s32.totalorder %s9, 1
    %p110 = por %p108, %p109
    %p111 = scmp.ne.s32.totalorder %s103, %s106
    %p112 = scmp.eq.s32.totalorder %s9, 0
    %p113 = por %p111, %p112
    %p114 = scmp.ne.s32.totalorder %s103, %s106
    %p115 = scmp.eq.s32.totalorder %s14, 1
    %p116 = por %p114, %p115
    %p117 = scmp.ne.s32.totalorder %s106, %s107
    %p118 = scmp.eq.s32.totalorder %s14, 0
    %p119 = por %p117, %p118
    %p120 = scmp.ne.s32.totalorder %s106, %s107
    %p121 = scmp.eq.s32.totalorder %s15, 1
    %p122 = por %p120, %p121
    %p124 = scmp.ne.s32.totalorder %s107, %s123
    %p125 = scmp.eq.s32.totalorder %s15, 0
    %p126 = por %p124, %p125
    %p127 = scmp.le.s32.totalorder 1, %s9
    %p128 = scmp.lt.s32.totalorder %s9, 3
    %p129 = pnand %p127, %p128
    %p130 = pneg %p129
    // Predicated region
    $region9: #{conv1x1_bn_relu.3} parent=5 // pred_check
      _
    $region10: #{conv1x1_bn_relu.3} parent=5 // pred_check_branch
      %132 = sbr.rel (%p129) target = $region12
    $region11: #{conv1x1_bn_relu.3} parent=5 // pred_region
      %s133 = ssub.s32 %s9, 1
      // Predicated region
      $region13: #{conv1x1_bn_relu.3} parent=11 // pred_check
        %p134 = pneg %p70
      $region14: #{conv1x1_bn_relu.3} parent=11 // pred_check_branch
        %136 = sbr.rel (%p134) target = $region16
      $region15: #{conv1x1_bn_relu.3} parent=11 // pred_region
        _
      $region16: #{conv1x1_bn_relu.3} parent=11 // pred_fallthru
        _
      // Predicated region
      $region17: #{conv1x1_bn_relu.3} parent=11 // pred_check
        %p137 = pneg %p91
      $region18: #{conv1x1_bn_relu.3} parent=11 // pred_check_branch
        %139 = sbr.rel (%p137) target = $region20
      $region19: #{conv1x1_bn_relu.3} parent=11 // pred_region
        _
      $region20: #{conv1x1_bn_relu.3} parent=11 // pred_fallthru
        _
    $region12: #{conv1x1_bn_relu.3} parent=5 // pred_fallthru
      _
    %p140 = scmp.lt.s32.totalorder %s9, 2
    // Predicated region
    $region21: #{conv1x1_bn_relu.3} parent=5 // pred_check
      %p141 = pneg %p140
    $region22: #{conv1x1_bn_relu.3} parent=5 // pred_check_branch
      %143 = sbr.rel (%p141) target = $region24
    $region23: #{conv1x1_bn_relu.3} parent=5 // pred_region
      // Predicated region
      $region25: #{conv1x1_bn_relu.3} parent=23 // pred_check
        %p144 = pneg %p43
      $region26: #{conv1x1_bn_relu.3} parent=23 // pred_check_branch
        %146 = sbr.rel (%p144) target = $region28
      $region27: #{conv1x1_bn_relu.3} parent=23 // pred_region
        %s147 = smul.u32 2, %s17
        %p148 = scmp.lt.s32.totalorder %s16, 1
        %s149 = scalar_select %p148, %s16, 1
        %p150 = scmp.lt.s32.totalorder %s147, 1
        %s151 = scalar_select %p150, %s147, 1
        %s152 = smul.addr %s149, 2
        %s153 = sadd.s32 %s151, %s152
        %s154 = smul.addr %s153, 4
        %s155 = scalar_lea.vmem %s0, %s154
        %s156 = smul.u32 2, %s17
      $region28: #{conv1x1_bn_relu.3} parent=23 // pred_fallthru
        _
    $region24: #{conv1x1_bn_relu.3} parent=5 // pred_fallthru
      _
    %p157 = scmp.le.s32.totalorder 1, %s9
    %p158 = scmp.lt.s32.totalorder %s9, 3
    %p159 = pnand %p157, %p158
    %p160 = pneg %p159
    // Predicated region
    $region29: #{conv1x1_bn_relu.3} parent=5 // pred_check
      _
    $region30: #{conv1x1_bn_relu.3} parent=5 // pred_check_branch
      %162 = sbr.rel (%p159) target = $region32
    $region31: #{conv1x1_bn_relu.3} parent=5 // pred_region
      %s163 = ssub.s32 %s9, 1
      %s164 = smul.u32 2, %s19
      %p165 = scmp.lt.s32.totalorder %s18, 1
      %s166 = scalar_select %p165, %s18, 1
      %p167 = scmp.lt.s32.totalorder %s164, 1
      %s168 = scalar_select %p167, %s164, 1
      %s169 = smul.addr %s166, 2
      %s170 = sadd.s32 %s168, %s169
      %s171 = smul.addr %s170, 4
      %s172 = scalar_lea.vmem %s0, %s171
      %p173 = pneg %p49
      %p174 = pneg %p46
      %p175 = pneg %p70
      %p176 = pneg %p67
      %p177 = pneg %p91
      %p178 = pneg %p88
      %p179 = pneg %p119
      %p180 = pneg %p116
      %s181 = smul.u32 2, %s19
      %p182 = scmp.lt.s32.totalorder %s18, 1
      %s183 = scalar_select %p182, %s18, 1
      %p184 = scmp.lt.s32.totalorder %s181, 1
      %s185 = scalar_select %p184, %s181, 1
      %s186 = smul.addr %s183, 2
      %s187 = sadd.s32 %s185, %s186
      %s188 = smul.addr %s187, 8
      %s189 = scalar_lea.vmem %s3, %s188
      %s190 = smul.u32 2, %s19
      %p191 = scmp.lt.s32.totalorder %s18, 1
      %s192 = scalar_select %p191, %s18, 1
      %p193 = scmp.lt.s32.totalorder %s190, 1
      %s194 = scalar_select %p193, %s190, 1
      %s195 = smul.addr %s192, 2
      %s196 = sadd.s32 %s194, %s195
      %s197 = smul.addr %s196, 4
      %s198 = scalar_lea.vmem %s0, %s197
      %s199 = smul.u32 2, %s19
      %s200 = smul.u32 2, %s19
      %p201 = scmp.lt.s32.totalorder %s18, 1
      %s202 = scalar_select %p201, %s18, 1
      %p203 = scmp.lt.s32.totalorder %s200, 1
      %s204 = scalar_select %p203, %s200, 1
      %s205 = smul.addr %s202, 2
      %s206 = sadd.s32 %s204, %s205
      %s207 = smul.addr %s206, 8
      %s208 = scalar_lea.vmem %s3, %s207
      %s209 = smul.u32 2, %s19
      %v210 = vld [vmem:[%s1] sm:$0xff]
      %v211 = vld [vmem:[%s198] sm:$0xff]
      %v212 = vld [vmem:[%s2] sm:$0xff]
      %214 = vset.pattern.permute.xlu0 0
      %215 = vperm.xlu0 %214, %v212
      %v216 = vpop.permute.xlu0 %215
      %v219 = vcombine.high %v211, %v211
      %vm220 = vcmask 31744
      %v222 = vsel %vm220, %v210, 0
      %vm224 = vcmask 1043456
      %v225 = vsel %vm224, %v211, 0
      %v227 = vsel %vm224, %v219, 0
      %229 = vmatprep.subr.mxu0 0.0
      %230 = vmatpush1.msra.mxu0 0.0
      %231 = vmatprep.subr.mxu0 0.0
      %232 = vmatpush1.msra.mxu0 0.0
      %233 = vmatprep.subr.mxu0 0.0
      %234 = vmatpush1.msra.mxu0 0.0
      %235 = vmatprep.subr.mxu0 0.0
      %236 = vmatpush1.msra.mxu0 0.0
      %237 = vmatprep.subr.mxu0 0.0
      %238 = vmatpush1.msra.mxu0 0.0
      %239 = vmatprep.subr.mxu0 0.0
      %240 = vmatpush1.msra.mxu0 0.0
      %241 = vmatprep.subr.mxu0 0.0
      %242 = vmatpush1.msra.mxu0 0.0
      %243 = vmatprep.subr.mxu0 0.0
      %244 = vmatpush1.msra.mxu0 0.0
      %245 = vmatprep.subr.mxu0 0.0
      %246 = vmatpush1.msra.mxu0 0.0
      %247 = vmatprep.subr.mxu0 0.0
      %248 = vmatpush1.msra.mxu0 0.0
      %249 = vmatprep.subr.mxu0 0.0
      %250 = vmatpush1.msra.mxu0 0.0
      %251 = vmatprep.subr.mxu0 0.0
      %252 = vmatpush1.msra.mxu0 0.0
      %253 = vmatprep.subr.mxu0 0.0
      %254 = vmatpush1.msra.mxu0 0.0
      %255 = vmatprep.subr.mxu0 0.0
      %256 = vmatpush1.msra.mxu0 0.0
      %257 = vmatprep.subr.mxu0 0.0
      %258 = vmatpush1.msra.mxu0 0.0
      %259 = vmatprep.subr.mxu0 %v227
      %260 = vmatpush1.msra.mxu0 %v225
      %261 = vmatprep.subr.mxu0 0.0
      %262 = vmatpush2.msra.mxu0 0.0
      %263 = vmatprep.subr.mxu0 0.0
      %264 = vmatpush2.msra.mxu0 0.0
      %265 = vmatprep.subr.mxu0 0.0
      %266 = vmatpush2.msra.mxu0 0.0
      %267 = vmatprep.subr.mxu0 0.0
      %268 = vmatpush2.msra.mxu0 0.0
      %269 = vmatprep.subr.mxu0 0.0
      %270 = vmatpush2.msra.mxu0 0.0
      %271 = vmatprep.subr.mxu0 0.0
      %272 = vmatpush2.msra.mxu0 0.0
      %273 = vmatprep.subr.mxu0 0.0
      %274 = vmatpush2.msra.mxu0 0.0
      %275 = vmatprep.subr.mxu0 0.0
      %276 = vmatpush2.msra.mxu0 0.0
      %277 = vmatprep.subr.mxu0 0.0
      %278 = vmatpush2.msra.mxu0 0.0
      %279 = vmatprep.subr.mxu0 0.0
      %280 = vmatpush2.msra.mxu0 0.0
      %281 = vmatprep.subr.mxu0 0.0
      %282 = vmatpush2.msra.mxu0 0.0
      %283 = vmatprep.subr.mxu0 0.0
      %284 = vmatpush2.msra.mxu0 0.0
      %285 = vmatprep.subr.mxu0 0.0
      %286 = vmatpush2.msra.mxu0 0.0
      %287 = vmatprep.subr.mxu0 0.0
      %288 = vmatpush2.msra.mxu0 0.0
      %289 = vmatprep.subr.mxu0 0.0
      %290 = vmatpush2.msra.mxu0 0.0
      %291 = vmatprep.subr.mxu0 0.0
      %292 = vmatpush2.msra.mxu0 0.0
      %293 = vmatprep.mubr.f32.mxu0 0.0
      %294 = vmatmul.mubr.f32.gmra.mxu0 %v222
      %v295 = vpop.f32.mrf.mxu0
      %v296 = vadd.f32 %v216, %v295
      %v297 = vpop.f32.mrf.mxu0
      %v298 = vadd.f32 %v216, %v297
      %299 = vdwg.mxu0
      %v300 = vmax.f32 %v296, 0.0
      %v301 = vmax.f32 %v298, 0.0
      %302 = vst [vmem:[%s208] sm:$0xff] %v300
      %303 = vst [vmem:[%s208 + $0x8] sm:$0xff] %v301
      %s304 = smul.u32 2, %s19
      %p305 = scmp.lt.s32.totalorder %s18, 1
      %s306 = scalar_select %p305, %s18, 1
      %p307 = scmp.lt.s32.totalorder %s304, 1
      %s308 = scalar_select %p307, %s304, 1
      %s309 = smul.addr %s306, 2
      %s310 = sadd.s32 %s308, %s309
      %s311 = smul.addr %s310, 8
      %s312 = scalar_lea.vmem %s3, %s311
      // Predicated region
      $region33: #{conv1x1_bn_relu.3} parent=31 // pred_check
        %p313 = pneg %p116
      $region34: #{conv1x1_bn_relu.3} parent=31 // pred_check_branch
        %315 = sbr.rel (%p313) target = $region36
      $region35: #{conv1x1_bn_relu.3} parent=31 // pred_region
        %s316 = smul.u32 2, %s19
      $region36: #{conv1x1_bn_relu.3} parent=31 // pred_fallthru
        _
    $region32: #{conv1x1_bn_relu.3} parent=5 // pred_fallthru
      _
    %p317 = scmp.le.s32.totalorder 2, %s9
    // Predicated region
    $region37: #{conv1x1_bn_relu.3} parent=5 // pred_check
      %p318 = pneg %p317
    $region38: #{conv1x1_bn_relu.3} parent=5 // pred_check_branch
      %320 = sbr.rel (%p318) target = $region40
    $region39: #{conv1x1_bn_relu.3} parent=5 // pred_region
      %s321 = ssub.s32 %s9, 2
      // Predicated region
      $region41: #{conv1x1_bn_relu.3} parent=39 // pred_check
        %p322 = pneg %p122
      $region42: #{conv1x1_bn_relu.3} parent=39 // pred_check_branch
        %324 = sbr.rel (%p322) target = $region44
      $region43: #{conv1x1_bn_relu.3} parent=39 // pred_region
        %s325 = smul.u32 2, %s21
        %p326 = scmp.lt.s32.totalorder %s20, 1
        %s327 = scalar_select %p326, %s20, 1
        %p328 = scmp.lt.s32.totalorder %s325, 1
        %s329 = scalar_select %p328, %s325, 1
        %s330 = smul.addr %s327, 2
        %s331 = sadd.s32 %s329, %s330
        %s332 = smul.addr %s331, 8
        %s333 = scalar_lea.vmem %s3, %s332
      $region44: #{conv1x1_bn_relu.3} parent=39 // pred_fallthru
        _
    $region40: #{conv1x1_bn_relu.3} parent=5 // pred_fallthru
      _
  $region6: #{conv1x1_bn_relu.3} parent=0 // loop_footer
    %s13 = sadd.s32 1, %s9
  $region7: #{conv1x1_bn_relu.3} parent=0 // loop_footer_branch
    %8 = sbr.rel target = $region3
  $region8: #{conv1x1_bn_relu.3} parent=0 // loop_exit
    _

</llo_original>
